<compile_context>
chip_gen: v7x
topology: tpu7x:2x2x1
jax: 0.10.0
libtpu: 0.0.40
codegen_flags: <defaults>
</compile_context>

<pallas_src>
import functools

import jax
import jax.numpy as jnp
from jax.experimental import pallas as pl
from jax.experimental.pallas import tpu as pltpu

_LANE = 128


def _round_up(x, m):
    return (x + m - 1) // m * m


def _vmem_budget_bytes():
    """Per-core VMEM budget with ~25% headroom for Mosaic internal scratch."""
    try:
        cap = int(pltpu.get_tpu_info().vmem_capacity_bytes)
    except Exception:
        cap = 64 * 2**20  # v7x per-TensorCore VMEM (smallest current generation)
    return int(cap * 0.75)


def _working_set_bytes(t_ci, t_co, t_hw, x_item, w_item, o_item, multi_k):
    ws = 2 * t_ci * t_hw * x_item       # activation tile, double-buffered
    ws += 2 * t_co * t_hw * o_item      # output tile, double-buffered
    ws += 2 * t_co * t_ci * w_item      # weight tile, double-buffered
    ws += 2 * t_co * 4                  # f32 shift
    if multi_k:
        ws += t_co * t_hw * 4           # f32 accumulator scratch
    return ws


def _choose_tiles(N, C_in, C_out, HW, x_item, w_item, o_item, budget):
    # C_in reduction tiling only when it is large and cleanly divisible (keeps
    # the reduction free of garbage from partial channel tiles).
    if C_in > 512 and C_in % 256 == 0:
        t_ci = 256
    else:
        t_ci = C_in
    multi_k = t_ci != C_in

    # C_out tiling: keep the MXU N-dim >=128 for realistic sizes, full dim when small.
    t_co = C_out if C_out <= 256 else 256

    # Pixel (lane) tile: largest multiple of 128 that fits the VMEM budget.
    hw128 = _round_up(max(HW, 1), _LANE)
    cap = min(8192, hw128)
    cands = sorted({c for c in (128, 256, 512, 1024, 2048, 4096, 8192, hw128)
                    if c <= cap})
    t_hw = cands[0]
    for c in cands:
        if _working_set_bytes(t_ci, t_co, c, x_item, w_item, o_item, multi_k) <= budget:
            t_hw = c

    # Extreme channel counts: shrink the C_out tile if even the smallest pixel
    # tile does not fit (keeps t_co a multiple of 8).
    while (_working_set_bytes(t_ci, t_co, t_hw, x_item, w_item, o_item, multi_k)
           > budget and t_co >= 16 and t_co % 16 == 0):
        t_co //= 2

    # Megacore (v7x): guarantee at least 2 parallel grid steps.
    def n_parallel(thw):
        return N * pl.cdiv(C_out, t_co) * pl.cdiv(HW, thw)

    while n_parallel(t_hw) < 2 and t_hw > _LANE:
        t_hw = _round_up(t_hw // 2, _LANE)

    return t_ci, t_co, t_hw, multi_k


def _conv1x1_fused_kernel(x_ref, w_ref, s_ref, o_ref, *, precision):
    # x_ref: (t_ci, t_hw)   activations, lane axis = pixels
    # w_ref: (t_co, t_ci)   BN-scale-folded weight (resident across HW steps)
    # s_ref: (t_co, 1)      folded conv-bias + BN shift, f32
    # o_ref: (t_co, t_hw)
    y = jnp.dot(w_ref[...], x_ref[...],
                preferred_element_type=jnp.float32, precision=precision)
    o_ref[...] = jnp.maximum(y + s_ref[...], 0.0).astype(o_ref.dtype)


def _conv1x1_reduce_kernel(x_ref, w_ref, s_ref, o_ref, acc_ref, *, precision):
    # Same as above but with an innermost C_in reduction axis (grid axis 3).
    k = pl.program_id(3)

    @pl.when(k == 0)
    def _():
        acc_ref[...] = jnp.zeros_like(acc_ref)

    acc_ref[...] += jnp.dot(w_ref[...], x_ref[...],
                            preferred_element_type=jnp.float32,
                            precision=precision)

    @pl.when(k == pl.num_programs(3) - 1)
    def _():
        o_ref[...] = jnp.maximum(acc_ref[...] + s_ref[...],
                                 0.0).astype(o_ref.dtype)


def conv1x1_bn_relu(x_nchw, weight, bias, gamma, beta, running_mean,
                    running_var, eps=1e-5, out_dtype=None):
    """Eval-mode Conv1x1 + BatchNorm2d + ReLU.

    x_nchw: (N, C_in, H, W); weight: (C_out, C_in, 1, 1) -> (N, C_out, H, W).
    The kernel consumes x in its given dtype (pass bf16 x for bf16 HBM traffic);
    BN scale folds into the weight, conv bias + BN shift fold into one f32
    per-channel shift, accumulation/epilogue stay f32.
    """
    N, C_in, H, W = x_nchw.shape
    C_out = weight.shape[0]
    HW = H * W

    x_dtype = jnp.dtype(x_nchw.dtype)
    o_dtype = jnp.dtype(out_dtype) if out_dtype is not None else x_dtype

    # ---- fold conv bias + BN running stats (exact, in f32) ----
    f32 = jnp.float32
    inv_std = jax.lax.rsqrt(running_var.astype(f32) + jnp.asarray(eps, f32))
    scale = gamma.astype(f32) * inv_std                                     # (C_out,)
    shift = beta.astype(f32) + (bias.astype(f32) - running_mean.astype(f32)) * scale
    w_fold = (weight.reshape(C_out, C_in).astype(f32) * scale[:, None]).astype(x_dtype)
    shift2d = shift.reshape(C_out, 1)                                        # keep f32

    x3d = x_nchw.reshape(N, C_in, HW)   # layout-free reshape; no pad, no cast

    budget = _vmem_budget_bytes()
    t_ci, t_co, t_hw, multi_k = _choose_tiles(
        N, C_in, C_out, HW,
        x_dtype.itemsize, x_dtype.itemsize, o_dtype.itemsize, budget)

    n_co = pl.cdiv(C_out, t_co)
    n_hw = pl.cdiv(HW, t_hw)

    prec = (jax.lax.Precision.HIGHEST if x_dtype == jnp.float32
            else jax.lax.Precision.DEFAULT)

    ws = _working_set_bytes(t_ci, t_co, t_hw, x_dtype.itemsize,
                            x_dtype.itemsize, o_dtype.itemsize, multi_k)
    vmem_limit = int(min(max(2 * ws, 32 * 2**20), budget))

    cost = pl.CostEstimate(
        flops=2 * N * HW * C_in * C_out,
        transcendentals=0,
        bytes_accessed=int(N * C_in * HW * x_dtype.itemsize
                           + C_out * C_in * x_dtype.itemsize
                           + C_out * 4
                           + N * C_out * HW * o_dtype.itemsize))

    if not multi_k:
        grid = (N, n_co, n_hw)
        kernel = functools.partial(_conv1x1_fused_kernel, precision=prec)
        in_specs = [
            pl.BlockSpec((None, C_in, t_hw), lambda n, co, j: (n, 0, j)),
            pl.BlockSpec((t_co, C_in), lambda n, co, j: (co, 0)),
            pl.BlockSpec((t_co, 1), lambda n, co, j: (co, 0)),
        ]
        out_specs = pl.BlockSpec((None, t_co, t_hw), lambda n, co, j: (n, co, j))
        scratch = []
        semantics = ("parallel", "parallel", "parallel")
    else:
        n_ci = C_in // t_ci  # t_ci divides C_in by construction
        grid = (N, n_co, n_hw, n_ci)
        kernel = functools.partial(_conv1x1_reduce_kernel, precision=prec)
        in_specs = [
            pl.BlockSpec((None, t_ci, t_hw), lambda n, co, j, k: (n, k, j)),
            pl.BlockSpec((t_co, t_ci), lambda n, co, j, k: (co, k)),
            pl.BlockSpec((t_co, 1), lambda n, co, j, k: (co, 0)),
        ]
        out_specs = pl.BlockSpec((None, t_co, t_hw),
                                 lambda n, co, j, k: (n, co, j))
        scratch = [pltpu.VMEM((t_co, t_hw), jnp.float32)]
        semantics = ("parallel", "parallel", "parallel", "arbitrary")

    y3d = pl.pallas_call(
        kernel,
        out_shape=jax.ShapeDtypeStruct((N, C_out, HW), o_dtype),
        grid_spec=pltpu.PrefetchScalarGridSpec(
            num_scalar_prefetch=0,
            grid=grid,
            in_specs=in_specs,
            out_specs=out_specs,
            scratch_shapes=scratch),
        compiler_params=pltpu.CompilerParams(
            dimension_semantics=semantics,
            vmem_limit_bytes=vmem_limit),
        cost_estimate=cost,
    )(x3d, w_fold, shift2d)

    return y3d.reshape(N, C_out, H, W)


def _reference(x, weight, bias, gamma, beta, running_mean, running_var, eps):
    C_out, C_in = weight.shape[0], weight.shape[1]
    y = jnp.einsum("nihw,oi->nohw", x, weight.reshape(C_out, C_in))
    y = y + bias[None, :, None, None]
    inv = gamma * jax.lax.rsqrt(running_var + eps)
    y = (y - running_mean[None, :, None, None]) * inv[None, :, None, None] \
        + beta[None, :, None, None]
    return jnp.maximum(y, 0.0)


if __name__ == "__main__":
    # Module config: Conv1x1(inplanes=4, planes=8); input NCHW (2, 4, 16, 16).
    N, C_in, H, W = 2, 4, 16, 16
    C_out = 8
    eps = 1e-5

    key = jax.random.PRNGKey(0)
    kx, kw, kb, kg, kbe, km, kv = jax.random.split(key, 7)

    x = jax.random.normal(kx, (N, C_in, H, W), dtype=jnp.float32)
    weight = jax.random.normal(kw, (C_out, C_in, 1, 1), dtype=jnp.float32) * 0.5
    bias = jax.random.normal(kb, (C_out,), dtype=jnp.float32) * 0.1
    gamma = jax.random.normal(kg, (C_out,), dtype=jnp.float32) * 0.1 + 1.0
    beta = jax.random.normal(kbe, (C_out,), dtype=jnp.float32) * 0.1
    running_mean = jax.random.normal(km, (C_out,), dtype=jnp.float32) * 0.1
    running_var = jax.random.uniform(kv, (C_out,), dtype=jnp.float32,
                                     minval=0.5, maxval=1.5)

    y_ref = _reference(x, weight, bias, gamma, beta, running_mean, running_var, eps)

    # f32 path (matches the PyTorch module's dtype).
    out = conv1x1_bn_relu(x, weight, bias, gamma, beta, running_mean,
                          running_var, eps=eps)
    out = jax.block_until_ready(out)
    assert out.shape == (N, C_out, H, W) and out.dtype == jnp.float32
    assert jnp.allclose(out, y_ref, atol=1e-4, rtol=1e-4)

    # bf16 I/O path: x is passed ALREADY in bf16 (no wrapper-side cast pass).
    out_bf16 = conv1x1_bn_relu(x.astype(jnp.bfloat16), weight, bias, gamma,
                               beta, running_mean, running_var, eps=eps)
    out_bf16 = jax.block_until_ready(out_bf16)
    assert out_bf16.dtype == jnp.bfloat16
    assert jnp.allclose(out_bf16.astype(jnp.float32), y_ref, atol=1e-1, rtol=1e-1)

    # Ragged spatial size (9*7 = 63, not a multiple of 128): exercised via a
    # partial tail tile — no host-side pad or slice.
    x2 = jax.random.normal(kx, (1, C_in, 9, 7), dtype=jnp.float32)
    out2 = conv1x1_bn_relu(x2, weight, bias, gamma, beta, running_mean,
                           running_var, eps=eps)
    out2 = jax.block_until_ready(out2)
    y_ref2 = _reference(x2, weight, bias, gamma, beta, running_mean,
                        running_var, eps)
    assert out2.shape == (1, C_out, 9, 7)
    assert jnp.allclose(out2, y_ref2, atol=1e-4, rtol=1e-4)

    print("KERNEL_OK")
</pallas_src>

<mosaic_0001>
module attributes {stable_mosaic.version = 11 : i64} {
  func.func @_conv1x1_fused_kernel(%arg0: i32, %arg1: i32, %arg2: i32, %arg3: memref<1x4x256xf32, #tpu.memory_space<vmem>>, %arg4: memref<8x4xf32, #tpu.memory_space<vmem>>, %arg5: memref<8x1xf32, #tpu.memory_space<vmem>>, %arg6: memref<1x8x256xf32, #tpu.memory_space<vmem>>) attributes {dimension_semantics = [#tpu.dimension_semantics<parallel>, #tpu.dimension_semantics<parallel>, #tpu.dimension_semantics<parallel>], iteration_bounds = array<i64: 2, 1, 1>, scalar_prefetch = 0 : i64, scratch_operands = 0 : i64, tpu.core_type = #tpu.core_type<tc>, window_params = [{transform_indices = @transform_0, window_bounds = array<i64: 1, 4, 256>}, {transform_indices = @transform_1, window_bounds = array<i64: 8, 4>}, {transform_indices = @transform_2, window_bounds = array<i64: 8, 1>}, {transform_indices = @transform_3, window_bounds = array<i64: 1, 8, 256>}]} {
    %c0 = arith.constant 0 : index
    %c0_0 = arith.constant 0 : index
    %0 = vector.load %arg4[%c0, %c0_0] : memref<8x4xf32, #tpu.memory_space<vmem>>, vector<8x4xf32>
    %c0_1 = arith.constant 0 : index
    %c0_2 = arith.constant 0 : index
    %c0_3 = arith.constant 0 : index
    %1 = vector.load %arg3[%c0_1, %c0_2, %c0_3] : memref<1x4x256xf32, #tpu.memory_space<vmem>>, vector<1x4x256xf32>
    %2 = vector.shape_cast %1 : vector<1x4x256xf32> to vector<4x256xf32>
    %cst = arith.constant dense<0.000000e+00> : vector<8x256xf32>
    %3 = tpu.matmul %0, %2, %cst {dimension_numbers = #tpu.dot_dimension_numbers<[1], [0], [0], [1], [0, 0, 1, 1], [], []>, precision = #tpu.contract_precision<fp32>} : vector<8x4xf32>, vector<4x256xf32>, vector<8x256xf32> -> vector<8x256xf32>
    %c0_4 = arith.constant 0 : index
    %c0_5 = arith.constant 0 : index
    %4 = vector.load %arg5[%c0_4, %c0_5] : memref<8x1xf32, #tpu.memory_space<vmem>>, vector<8x1xf32>
    %5 = vector.broadcast %4 : vector<8x1xf32> to vector<8x256xf32>
    %6 = arith.addf %3, %5 : vector<8x256xf32>
    %cst_6 = arith.constant 0.000000e+00 : f32
    %7 = vector.broadcast %cst_6 : f32 to vector<8x256xf32>
    %8 = arith.maximumf %6, %7 : vector<8x256xf32>
    %c0_7 = arith.constant 0 : index
    %c0_8 = arith.constant 0 : index
    %c0_9 = arith.constant 0 : index
    %9 = vector.load %arg6[%c0_7, %c0_8, %c0_9] : memref<1x8x256xf32, #tpu.memory_space<vmem>>, vector<1x8x256xf32>
    %10 = vector.shape_cast %9 : vector<1x8x256xf32> to vector<8x256xf32>
    %11 = vector.shape_cast %8 : vector<8x256xf32> to vector<1x8x256xf32>
    tpu.vector_store %arg6[%c0_7, %c0_8, %c0_9], %11 {strides = array<i32>} : memref<1x8x256xf32, #tpu.memory_space<vmem>>, vector<1x8x256xf32>,
    return
  }
  func.func @transform_0(%arg0: i32, %arg1: i32, %arg2: i32) -> (i32, i32, i32) {
    %c0_i32 = arith.constant 0 : i32
    %c0_i32_0 = arith.constant 0 : i32
    return %arg0, %c0_i32, %arg2 : i32, i32, i32
  }
  func.func @transform_1(%arg0: i32, %arg1: i32, %arg2: i32) -> (i32, i32) {
    %c0_i32 = arith.constant 0 : i32
    %c0_i32_0 = arith.constant 0 : i32
    return %arg1, %c0_i32 : i32, i32
  }
  func.func @transform_2(%arg0: i32, %arg1: i32, %arg2: i32) -> (i32, i32) {
    %c0_i32 = arith.constant 0 : i32
    %c0_i32_0 = arith.constant 0 : i32
    return %arg1, %c0_i32 : i32, i32
  }
  func.func @transform_3(%arg0: i32, %arg1: i32, %arg2: i32) -> (i32, i32, i32) {
    %c0_i32 = arith.constant 0 : i32
    return %arg0, %arg1, %arg2 : i32, i32, i32
  }
}

</mosaic_0001>

<llo_original>
// kernel: tpu_custom_call.1
$region0: #{tpu_custom_call.1}
  #allocation0 [shape = 'u32[]', space=smem, size = 0x4, offset = 0x4, fixed_abs, tag = 'smem constant byte address 0x4 - core index']
  #allocation1 [shape = 'u32[144,128]{1,0:T(1,128)}', space=vmem, size = 0x12000, scoped, tag = 'internal scratch']
  %s0 = inlined_call_operand.vmem [shape: f32[2,4,256], index: 0, kind: input, shape index: {}]
  %s1 = inlined_call_operand.vmem [shape: f32[8,4], index: 1, kind: input, shape index: {}]
  %s2 = inlined_call_operand.vmem [shape: f32[8,1], index: 2, kind: input, shape index: {}]
  %s3 = inlined_call_operand.hbm [shape: f32[2,8,256], index: 3, kind: output, shape index: {}]
  %s4 = sld [smem:[#allocation0]]
  $region45: #{tpu_custom_call.1} parent=0
    _
  %s6 = ssub.s32 1, %s4
  %s7 = scalar_select 0, %s6, %s4
  $region1: #{tpu_custom_call.1} parent=0
    #allocation2 [shape = 'u8[16384]{0}', space=vmem, size = 0x4000, scoped, tag = 'output window, operand 0']
    #allocation3 [shape = 's32[2]{0}', space=sflag, size = 0x8, scoped, tag = 'scoped memory for tpu_custom_call.1']
    %8 = vsyncpa [#allocation3], 0
    %s9 = scalar_lea.sflag [#allocation3], 1
    %10 = vsyncpa %s9, 0
    loop: start=0, step=1, limit=4
    $region2: #{tpu_custom_call.1} parent=1 // loop_pre_header
      _
    $region3: #{tpu_custom_call.1} parent=1 // loop_header
      %s12 = sphi 0, %s16
      %p13 = scmp.ge.s32.totalorder %s12, 4
      %s19 = sphi 0, %s38
      %s20 = sphi 0, %s34
      %s21 = sphi 0, %s30
      %s22 = sphi 0, %s19
      %s23 = sphi 0, %s20
      %s24 = sphi 0, %s21
      %s25 = sphi 0, %s22
      %s26 = sphi 0, %s23
      %s27 = sphi 0, %s24
      %s43 = sphi 0, %s45
      %s46 = sphi 0, %s43
      %s47 = sphi 0, %s46
      %s63 = sphi 0, %s47
      %s69 = sphi 0, %s71
      %s72 = sphi 0, %s69
      %s73 = sphi 0, %s72
      %s89 = sphi 0, %s73
      %s95 = sphi 0, %s97
      %s98 = sphi 0, %s95
      %s99 = sphi 0, %s98
      %s115 = sphi 0, %s99
      %s125 = sphi 0, %s127
      %s128 = sphi 0, %s125
      %s129 = sphi 0, %s128
      %s145 = sphi 0, %s129
    $region4: #{tpu_custom_call.1} parent=1 // loop_header_branch
      %15 = sbr.rel (%p13) target = $region8
    $region5: #{tpu_custom_call.1} parent=1 // loop_body
      %s17 = ssub.s32 %s12, 1
      %s18 = ssub.s32 %s12, 2
      %s28 = sadd.s32 1, %s21
      %p29 = scmp.ge.s32.totalorder %s28, 1
      %s30 = scalar_select %p29, 0, %s28
      %s31 = sadd.s32 1, %s20
      %s32 = scalar_select %p29, %s31, %s20
      %p33 = scmp.ge.s32.totalorder %s32, 1
      %s34 = scalar_select %p33, 0, %s32
      %s35 = sadd.s32 1, %s19
      %s36 = scalar_select %p33, %s35, %s19
      %p37 = scmp.ge.s32.totalorder %s36, 2
      %s38 = scalar_select %p37, 0, %s36
      %s39 = ssub.s32 %s19, %s38
      %s40 = ssub.s32 %s21, %s30
      %s41 = sor.u32 %s39, %s40
      %p42 = scmp.eq.s32.totalorder %s41, 0
      %s44 = sadd.s32 %s43, 1
      %s45 = scalar_select %p42, %s43, %s44
      %p48 = pneg %p42
      %p49 = scmp.eq.s32.totalorder %s12, 1
      %p50 = por %p48, %p49
      %p51 = scmp.ne.s32.totalorder %s43, %s46
      %p52 = scmp.eq.s32.totalorder %s12, 0
      %p53 = por %p51, %p52
      %p54 = scmp.ne.s32.totalorder %s43, %s46
      %p55 = scmp.eq.s32.totalorder %s17, 1
      %p56 = por %p54, %p55
      %p57 = scmp.ne.s32.totalorder %s46, %s47
      %p58 = scmp.eq.s32.totalorder %s17, 0
      %p59 = por %p57, %p58
      %p60 = scmp.ne.s32.totalorder %s46, %s47
      %p61 = scmp.eq.s32.totalorder %s18, 1
      %p62 = por %p60, %p61
      %p64 = scmp.ne.s32.totalorder %s47, %s63
      %p65 = scmp.eq.s32.totalorder %s18, 0
      %p66 = por %p64, %p65
      %s67 = ssub.s32 %s20, %s34
      %p68 = scmp.eq.s32.totalorder %s67, 0
      %s70 = sadd.s32 %s69, 1
      %s71 = scalar_select %p68, %s69, %s70
      %p74 = pneg %p68
      %p75 = scmp.eq.s32.totalorder %s12, 1
      %p76 = por %p74, %p75
      %p77 = scmp.ne.s32.totalorder %s69, %s72
      %p78 = scmp.eq.s32.totalorder %s12, 0
      %p79 = por %p77, %p78
      %p80 = scmp.ne.s32.totalorder %s69, %s72
      %p81 = scmp.eq.s32.totalorder %s17, 1
      %p82 = por %p80, %p81
      %p83 = scmp.ne.s32.totalorder %s72, %s73
      %p84 = scmp.eq.s32.totalorder %s17, 0
      %p85 = por %p83, %p84
      %p86 = scmp.ne.s32.totalorder %s72, %s73
      %p87 = scmp.eq.s32.totalorder %s18, 1
      %p88 = por %p86, %p87
      %p90 = scmp.ne.s32.totalorder %s73, %s89
      %p91 = scmp.eq.s32.totalorder %s18, 0
      %p92 = por %p90, %p91
      %s93 = ssub.s32 %s20, %s34
      %p94 = scmp.eq.s32.totalorder %s93, 0
      %s96 = sadd.s32 %s95, 1
      %s97 = scalar_select %p94, %s95, %s96
      %p100 = pneg %p94
      %p101 = scmp.eq.s32.totalorder %s12, 1
      %p102 = por %p100, %p101
      %p103 = scmp.ne.s32.totalorder %s95, %s98
      %p104 = scmp.eq.s32.totalorder %s12, 0
      %p105 = por %p103, %p104
      %p106 = scmp.ne.s32.totalorder %s95, %s98
      %p107 = scmp.eq.s32.totalorder %s17, 1
      %p108 = por %p106, %p107
      %p109 = scmp.ne.s32.totalorder %s98, %s99
      %p110 = scmp.eq.s32.totalorder %s17, 0
      %p111 = por %p109, %p110
      %p112 = scmp.ne.s32.totalorder %s98, %s99
      %p113 = scmp.eq.s32.totalorder %s18, 1
      %p114 = por %p112, %p113
      %p116 = scmp.ne.s32.totalorder %s99, %s115
      %p117 = scmp.eq.s32.totalorder %s18, 0
      %p118 = por %p116, %p117
      %s119 = ssub.s32 %s19, %s38
      %s120 = ssub.s32 %s20, %s34
      %s121 = sor.u32 %s119, %s120
      %s122 = ssub.s32 %s21, %s30
      %s123 = sor.u32 %s121, %s122
      %p124 = scmp.eq.s32.totalorder %s123, 0
      %s126 = sadd.s32 %s125, 1
      %s127 = scalar_select %p124, %s125, %s126
      %p130 = pneg %p124
      %p131 = scmp.eq.s32.totalorder %s12, 1
      %p132 = por %p130, %p131
      %p133 = scmp.ne.s32.totalorder %s125, %s128
      %p134 = scmp.eq.s32.totalorder %s12, 0
      %p135 = por %p133, %p134
      %p136 = scmp.ne.s32.totalorder %s125, %s128
      %p137 = scmp.eq.s32.totalorder %s17, 1
      %p138 = por %p136, %p137
      %p139 = scmp.ne.s32.totalorder %s128, %s129
      %p140 = scmp.eq.s32.totalorder %s17, 0
      %p141 = por %p139, %p140
      %p142 = scmp.ne.s32.totalorder %s128, %s129
      %p143 = scmp.eq.s32.totalorder %s18, 1
      %p144 = por %p142, %p143
      %p146 = scmp.ne.s32.totalorder %s129, %s145
      %p147 = scmp.eq.s32.totalorder %s18, 0
      %p148 = por %p146, %p147
      %p149 = scmp.le.s32.totalorder 1, %s12
      %p150 = scmp.lt.s32.totalorder %s12, 3
      %p151 = pnand %p149, %p150
      %p152 = pneg %p151
      // Predicated region
      $region9: #{tpu_custom_call.1} parent=5 // pred_check
        _
      $region10: #{tpu_custom_call.1} parent=5 // pred_check_branch
        %154 = sbr.rel (%p151) target = $region12
      $region11: #{tpu_custom_call.1} parent=5 // pred_region
        %s155 = ssub.s32 %s12, 1
        // Predicated region
        $region13: #{tpu_custom_call.1} parent=11 // pred_check
          %p156 = pneg %p85
        $region14: #{tpu_custom_call.1} parent=11 // pred_check_branch
          %158 = sbr.rel (%p156) target = $region16
        $region15: #{tpu_custom_call.1} parent=11 // pred_region
          %p159 = scmp.lt.s32.totalorder %s23, 0
          %s160 = scalar_select %p159, %s23, 0
          %s161 = smul.addr %s160, 8
          %s162 = scalar_lea.vmem %s1, %s161
        $region16: #{tpu_custom_call.1} parent=11 // pred_fallthru
          _
        // Predicated region
        $region17: #{tpu_custom_call.1} parent=11 // pred_check
          %p163 = pneg %p111
        $region18: #{tpu_custom_call.1} parent=11 // pred_check_branch
          %165 = sbr.rel (%p163) target = $region20
        $region19: #{tpu_custom_call.1} parent=11 // pred_region
          %p166 = scmp.lt.s32.totalorder %s23, 0
          %s167 = scalar_select %p166, %s23, 0
          %s168 = smul.addr %s167, 8
          %s169 = scalar_lea.vmem %s2, %s168
        $region20: #{tpu_custom_call.1} parent=11 // pred_fallthru
          _
      $region12: #{tpu_custom_call.1} parent=5 // pred_fallthru
        _
      %p170 = scmp.lt.s32.totalorder %s12, 2
      // Predicated region
      $region21: #{tpu_custom_call.1} parent=5 // pred_check
        %p171 = pneg %p170
      $region22: #{tpu_custom_call.1} parent=5 // pred_check_branch
        %173 = sbr.rel (%p171) target = $region24
      $region23: #{tpu_custom_call.1} parent=5 // pred_region
        // Predicated region
        $region25: #{tpu_custom_call.1} parent=23 // pred_check
          %p174 = pneg %p53
        $region26: #{tpu_custom_call.1} parent=23 // pred_check_branch
          %176 = sbr.rel (%p174) target = $region28
        $region27: #{tpu_custom_call.1} parent=23 // pred_region
          %s177 = smul.u32 2, %s21
          %p178 = scmp.lt.s32.totalorder %s19, 1
          %s179 = scalar_select %p178, %s19, 1
          %p180 = scmp.lt.s32.totalorder %s177, 1
          %s181 = scalar_select %p180, %s177, 1
          %s182 = smul.addr %s179, 2
          %s183 = sadd.s32 %s181, %s182
          %s184 = smul.addr %s183, 4
          %s185 = scalar_lea.vmem %s0, %s184
          %s186 = smul.u32 2, %s21
        $region28: #{tpu_custom_call.1} parent=23 // pred_fallthru
          _
      $region24: #{tpu_custom_call.1} parent=5 // pred_fallthru
        _
      %p187 = scmp.le.s32.totalorder 1, %s12
      %p188 = scmp.lt.s32.totalorder %s12, 3
      %p189 = pnand %p187, %p188
      %p190 = pneg %p189
      // Predicated region
      $region29: #{tpu_custom_call.1} parent=5 // pred_check
        _
      $region30: #{tpu_custom_call.1} parent=5 // pred_check_branch
        %192 = sbr.rel (%p189) target = $region32
      $region31: #{tpu_custom_call.1} parent=5 // pred_region
        %s193 = ssub.s32 %s12, 1
        %s194 = smul.u32 2, %s24
        %p195 = scmp.lt.s32.totalorder %s22, 1
        %s196 = scalar_select %p195, %s22, 1
        %p197 = scmp.lt.s32.totalorder %s194, 1
        %s198 = scalar_select %p197, %s194, 1
        %s199 = smul.addr %s196, 2
        %s200 = sadd.s32 %s198, %s199
        %s201 = smul.addr %s200, 4
        %s202 = scalar_lea.vmem %s0, %s201
        %p203 = pneg %p59
        %p204 = pneg %p56
        %p205 = scmp.lt.s32.totalorder %s23, 0
        %s206 = scalar_select %p205, %s23, 0
        %s207 = smul.addr %s206, 8
        %s208 = scalar_lea.vmem %s1, %s207
        %p209 = pneg %p85
        %p210 = pneg %p82
        %p211 = scmp.lt.s32.totalorder %s23, 0
        %s212 = scalar_select %p211, %s23, 0
        %s213 = smul.addr %s212, 8
        %s214 = scalar_lea.vmem %s2, %s213
        %p215 = pneg %p111
        %p216 = pneg %p108
        %p217 = pneg %p141
        %p218 = pneg %p138
        %s219 = sand.u32 %s128, 1
        %s220 = scalar_lea.sflag [#allocation3], %s219
        %s221 = sand.u32 %s128, 1
        %s222 = smul.addr %s221, 16
        %s223 = scalar_lea.vmem [#allocation2], %s222
        %s224 = smul.u32 2, %s24
        %p225 = scmp.lt.s32.totalorder %s22, 1
        %s226 = scalar_select %p225, %s22, 1
        %p227 = scmp.lt.s32.totalorder %s224, 1
        %s228 = scalar_select %p227, %s224, 1
        %s229 = smul.addr %s226, 2
        %s230 = sadd.s32 %s228, %s229
        %s231 = smul.addr %s230, 4
        %s232 = scalar_lea.vmem %s0, %s231
        %s233 = smul.u32 2, %s24
        %p234 = scmp.lt.s32.totalorder %s23, 0
        %s235 = scalar_select %p234, %s23, 0
        %s236 = smul.addr %s235, 8
        %s237 = scalar_lea.vmem %s1, %s236
        %p238 = scmp.lt.s32.totalorder %s23, 0
        %s239 = scalar_select %p238, %s23, 0
        %s240 = smul.addr %s239, 8
        %s241 = scalar_lea.vmem %s2, %s240
        %s242 = smul.u32 2, %s24
        %v243 = vld [vmem:[%s237] sm:$0xff]
        %v244 = vld [vmem:[%s232] sm:$0xff]
        %v245 = vld [vmem:[%s241] sm:$0xff]
        %247 = vset.pattern.permute.xlu0 0
        %248 = vperm.xlu0 %247, %v245
        %v249 = vpop.permute.xlu0 %248
        %v252 = vcombine.high %v244, %v244
        %vm253 = vcmask 31744
        %v255 = vsel %vm253, %v243, 0
        %vm257 = vcmask 1043456
        %v258 = vsel %vm257, %v244, 0
        %v260 = vsel %vm257, %v252, 0
        %v262 = vand.u32 %v260, 4294901760
        %263 = vmatprep.subr.mxu0 %v262
        %v264 = vand.u32 %v258, 4294901760
        %265 = vmatpush1.msra.mxu0 %v264
        %266 = vmatprep.subr.mxu0 0.0
        %267 = vmatpush1.msra.mxu0 0.0
        %268 = vmatprep.subr.mxu0 0.0
        %269 = vmatpush1.msra.mxu0 0.0
        %270 = vmatprep.subr.mxu0 0.0
        %271 = vmatpush1.msra.mxu0 0.0
        %272 = vmatprep.subr.mxu0 0.0
        %273 = vmatpush1.msra.mxu0 0.0
        %274 = vmatprep.subr.mxu0 0.0
        %275 = vmatpush1.msra.mxu0 0.0
        %276 = vmatprep.subr.mxu0 0.0
        %277 = vmatpush1.msra.mxu0 0.0
        %278 = vmatprep.subr.mxu0 0.0
        %279 = vmatpush1.msra.mxu0 0.0
        %280 = vmatprep.subr.mxu0 0.0
        %281 = vmatpush1.msra.mxu0 0.0
        %282 = vmatprep.subr.mxu0 0.0
        %283 = vmatpush1.msra.mxu0 0.0
        %284 = vmatprep.subr.mxu0 0.0
        %285 = vmatpush1.msra.mxu0 0.0
        %286 = vmatprep.subr.mxu0 0.0
        %287 = vmatpush1.msra.mxu0 0.0
        %288 = vmatprep.subr.mxu0 0.0
        %289 = vmatpush1.msra.mxu0 0.0
        %290 = vmatprep.subr.mxu0 0.0
        %291 = vmatpush1.msra.mxu0 0.0
        %292 = vmatprep.subr.mxu0 0.0
        %293 = vmatpush1.msra.mxu0 0.0
        %294 = vmatprep.subr.mxu0 0.0
        %295 = vmatpush1.msra.mxu0 0.0
        %296 = vmatprep.subr.mxu0 0.0
        %297 = vmatpush1.msra.mxu0 0.0
        %298 = vmatprep.subr.mxu0 0.0
        %299 = vmatpush1.msra.mxu0 0.0
        %300 = vmatprep.subr.mxu0 0.0
        %301 = vmatpush1.msra.mxu0 0.0
        %302 = vmatprep.subr.mxu0 0.0
        %303 = vmatpush1.msra.mxu0 0.0
        %304 = vmatprep.subr.mxu0 0.0
        %305 = vmatpush1.msra.mxu0 0.0
        %306 = vmatprep.subr.mxu0 0.0
        %307 = vmatpush1.msra.mxu0 0.0
        %308 = vmatprep.subr.mxu0 0.0
        %309 = vmatpush1.msra.mxu0 0.0
        %310 = vmatprep.subr.mxu0 0.0
        %311 = vmatpush1.msra.mxu0 0.0
        %312 = vmatprep.subr.mxu0 0.0
        %313 = vmatpush1.msra.mxu0 0.0
        %314 = vmatprep.subr.mxu0 0.0
        %315 = vmatpush1.msra.mxu0 0.0
        %316 = vmatprep.subr.mxu0 0.0
        %317 = vmatpush1.msra.mxu0 0.0
        %318 = vmatprep.subr.mxu0 0.0
        %319 = vmatpush1.msra.mxu0 0.0
        %320 = vmatprep.subr.mxu0 0.0
        %321 = vmatpush1.msra.mxu0 0.0
        %322 = vmatprep.subr.mxu0 0.0
        %323 = vmatpush1.msra.mxu0 0.0
        %324 = vmatprep.subr.mxu0 0.0
        %325 = vmatpush1.msra.mxu0 0.0
        %326 = vmatprep.subr.mxu0 0.0
        %327 = vmatpush1.msra.mxu0 0.0
        %328 = vmatprep.mubr.f32.mxu0 0.0
        %v329 = vand.u32 %v255, 4294901760
        %v330 = vsub.f32 %v255, %v329
        %v331 = vand.u32 %v330, 4294901760
        %v332 = vsub.f32 %v330, %v331
        %v333 = vand.u32 %v332, 4294901760
        %334 = vmatmul.mubr.f32.gmra.mrb[0].mxu0 %v333
        %v335 = vpop.f32.mrb[0].mxu0
        %v336 = vadd.f32 %v249, %v335
        %v337 = vpop.f32.mrb[0].mxu0
        %v338 = vadd.f32 %v249, %v337
        %339 = vdwg.mxu0
        %v340 = vand.u32 %v260, 4294901760
        %v341 = vsub.f32 %v260, %v340
        %v342 = vand.u32 %v341, 4294901760
        %v343 = vsub.f32 %v341, %v342
        %v344 = vand.u32 %v343, 4294901760
        %345 = vmatprep.subr.mxu0 %v344
        %v346 = vand.u32 %v258, 4294901760
        %v347 = vsub.f32 %v258, %v346
        %v348 = vand.u32 %v347, 4294901760
        %v349 = vsub.f32 %v347, %v348
        %v350 = vand.u32 %v349, 4294901760
        %351 = vmatpush1.msra.mxu0 %v350
        %352 = vmatprep.subr.mxu0 0.0
        %353 = vmatpush1.msra.mxu0 0.0
        %354 = vmatprep.subr.mxu0 0.0
        %355 = vmatpush1.msra.mxu0 0.0
        %356 = vmatprep.subr.mxu0 0.0
        %357 = vmatpush1.msra.mxu0 0.0
        %358 = vmatprep.subr.mxu0 0.0
        %359 = vmatpush1.msra.mxu0 0.0
        %360 = vmatprep.subr.mxu0 0.0
        %361 = vmatpush1.msra.mxu0 0.0
        %362 = vmatprep.subr.mxu0 0.0
        %363 = vmatpush1.msra.mxu0 0.0
        %364 = vmatprep.subr.mxu0 0.0
        %365 = vmatpush1.msra.mxu0 0.0
        %366 = vmatprep.subr.mxu0 0.0
        %367 = vmatpush1.msra.mxu0 0.0
        %368 = vmatprep.subr.mxu0 0.0
        %369 = vmatpush1.msra.mxu0 0.0
        %370 = vmatprep.subr.mxu0 0.0
        %371 = vmatpush1.msra.mxu0 0.0
        %372 = vmatprep.subr.mxu0 0.0
        %373 = vmatpush1.msra.mxu0 0.0
        %374 = vmatprep.subr.mxu0 0.0
        %375 = vmatpush1.msra.mxu0 0.0
        %376 = vmatprep.subr.mxu0 0.0
        %377 = vmatpush1.msra.mxu0 0.0
        %378 = vmatprep.subr.mxu0 0.0
        %379 = vmatpush1.msra.mxu0 0.0
        %380 = vmatprep.subr.mxu0 0.0
        %381 = vmatpush1.msra.mxu0 0.0
        %382 = vmatprep.subr.mxu0 0.0
        %383 = vmatpush1.msra.mxu0 0.0
        %384 = vmatprep.subr.mxu0 0.0
        %385 = vmatpush1.msra.mxu0 0.0
        %386 = vmatprep.subr.mxu0 0.0
        %387 = vmatpush1.msra.mxu0 0.0
        %388 = vmatprep.subr.mxu0 0.0
        %389 = vmatpush1.msra.mxu0 0.0
        %390 = vmatprep.subr.mxu0 0.0
        %391 = vmatpush1.msra.mxu0 0.0
        %392 = vmatprep.subr.mxu0 0.0
        %393 = vmatpush1.msra.mxu0 0.0
        %394 = vmatprep.subr.mxu0 0.0
        %395 = vmatpush1.msra.mxu0 0.0
        %396 = vmatprep.subr.mxu0 0.0
        %397 = vmatpush1.msra.mxu0 0.0
        %398 = vmatprep.subr.mxu0 0.0
        %399 = vmatpush1.msra.mxu0 0.0
        %400 = vmatprep.subr.mxu0 0.0
        %401 = vmatpush1.msra.mxu0 0.0
        %402 = vmatprep.subr.mxu0 0.0
        %403 = vmatpush1.msra.mxu0 0.0
        %404 = vmatprep.subr.mxu0 0.0
        %405 = vmatpush1.msra.mxu0 0.0
        %406 = vmatprep.subr.mxu0 0.0
        %407 = vmatpush1.msra.mxu0 0.0
        %408 = vmatprep.subr.mxu0 0.0
        %409 = vmatpush1.msra.mxu0 0.0
        %410 = vmatprep.subr.mxu0 0.0
        %411 = vmatpush1.msra.mxu0 0.0
        %412 = vmatprep.subr.mxu0 0.0
        %413 = vmatpush1.msra.mxu0 0.0
        %414 = vmatprep.mubr.f32.mxu0 0.0
        %v415 = vand.u32 %v255, 4294901760
        %416 = vmatmul.mubr.f32.gmra.mrb[0].mxu0 %v415
        %v417 = vpop.f32.mrb[0].mxu0
        %v418 = vadd.f32 %v336, %v417
        %v419 = vpop.f32.mrb[0].mxu0
        %v420 = vadd.f32 %v338, %v419
        %421 = vdwg.mxu0
        %v422 = vand.u32 %v260, 4294901760
        %v423 = vsub.f32 %v260, %v422
        %424 = vmatprep.subr.mxu0 %v423
        %v425 = vand.u32 %v258, 4294901760
        %v426 = vsub.f32 %v258, %v425
        %427 = vmatpush1.msra.mxu0 %v426
        %428 = vmatprep.subr.mxu0 0.0
        %429 = vmatpush1.msra.mxu0 0.0
        %430 = vmatprep.subr.mxu0 0.0
        %431 = vmatpush1.msra.mxu0 0.0
        %432 = vmatprep.subr.mxu0 0.0
        %433 = vmatpush1.msra.mxu0 0.0
        %434 = vmatprep.subr.mxu0 0.0
        %435 = vmatpush1.msra.mxu0 0.0
        %436 = vmatprep.subr.mxu0 0.0
        %437 = vmatpush1.msra.mxu0 0.0
        %438 = vmatprep.subr.mxu0 0.0
        %439 = vmatpush1.msra.mxu0 0.0
        %440 = vmatprep.subr.mxu0 0.0
        %441 = vmatpush1.msra.mxu0 0.0
        %442 = vmatprep.subr.mxu0 0.0
        %443 = vmatpush1.msra.mxu0 0.0
        %444 = vmatprep.subr.mxu0 0.0
        %445 = vmatpush1.msra.mxu0 0.0
        %446 = vmatprep.subr.mxu0 0.0
        %447 = vmatpush1.msra.mxu0 0.0
        %448 = vmatprep.subr.mxu0 0.0
        %449 = vmatpush1.msra.mxu0 0.0
        %450 = vmatprep.subr.mxu0 0.0
        %451 = vmatpush1.msra.mxu0 0.0
        %452 = vmatprep.subr.mxu0 0.0
        %453 = vmatpush1.msra.mxu0 0.0
        %454 = vmatprep.subr.mxu0 0.0
        %455 = vmatpush1.msra.mxu0 0.0
        %456 = vmatprep.subr.mxu0 0.0
        %457 = vmatpush1.msra.mxu0 0.0
        %458 = vmatprep.subr.mxu0 0.0
        %459 = vmatpush1.msra.mxu0 0.0
        %460 = vmatprep.subr.mxu0 0.0
        %461 = vmatpush1.msra.mxu0 0.0
        %462 = vmatprep.subr.mxu0 0.0
        %463 = vmatpush1.msra.mxu0 0.0
        %464 = vmatprep.subr.mxu0 0.0
        %465 = vmatpush1.msra.mxu0 0.0
        %466 = vmatprep.subr.mxu0 0.0
        %467 = vmatpush1.msra.mxu0 0.0
        %468 = vmatprep.subr.mxu0 0.0
        %469 = vmatpush1.msra.mxu0 0.0
        %470 = vmatprep.subr.mxu0 0.0
        %471 = vmatpush1.msra.mxu0 0.0
        %472 = vmatprep.subr.mxu0 0.0
        %473 = vmatpush1.msra.mxu0 0.0
        %474 = vmatprep.subr.mxu0 0.0
        %475 = vmatpush1.msra.mxu0 0.0
        %476 = vmatprep.subr.mxu0 0.0
        %477 = vmatpush1.msra.mxu0 0.0
        %478 = vmatprep.subr.mxu0 0.0
        %479 = vmatpush1.msra.mxu0 0.0
        %480 = vmatprep.subr.mxu0 0.0
        %481 = vmatpush1.msra.mxu0 0.0
        %482 = vmatprep.subr.mxu0 0.0
        %483 = vmatpush1.msra.mxu0 0.0
        %484 = vmatprep.subr.mxu0 0.0
        %485 = vmatpush1.msra.mxu0 0.0
        %486 = vmatprep.subr.mxu0 0.0
        %487 = vmatpush1.msra.mxu0 0.0
        %488 = vmatprep.subr.mxu0 0.0
        %489 = vmatpush1.msra.mxu0 0.0
        %490 = vmatprep.mubr.f32.mxu0 0.0
        %v491 = vand.u32 %v255, 4294901760
        %v492 = vsub.f32 %v255, %v491
        %493 = vmatmul.mubr.f32.gmra.mrb[0].mxu0 %v492
        %v494 = vpop.f32.mrb[0].mxu0
        %v495 = vadd.f32 %v418, %v494
        %v496 = vpop.f32.mrb[0].mxu0
        %v497 = vadd.f32 %v420, %v496
        %498 = vdwg.mxu0
        %v499 = vand.u32 %v260, 4294901760
        %500 = vmatprep.subr.mxu0 %v499
        %v501 = vand.u32 %v258, 4294901760
        %502 = vmatpush1.msra.mxu0 %v501
        %503 = vmatprep.subr.mxu0 0.0
        %504 = vmatpush1.msra.mxu0 0.0
        %505 = vmatprep.subr.mxu0 0.0
        %506 = vmatpush1.msra.mxu0 0.0
        %507 = vmatprep.subr.mxu0 0.0
        %508 = vmatpush1.msra.mxu0 0.0
        %509 = vmatprep.subr.mxu0 0.0
        %510 = vmatpush1.msra.mxu0 0.0
        %511 = vmatprep.subr.mxu0 0.0
        %512 = vmatpush1.msra.mxu0 0.0
        %513 = vmatprep.subr.mxu0 0.0
        %514 = vmatpush1.msra.mxu0 0.0
        %515 = vmatprep.subr.mxu0 0.0
        %516 = vmatpush1.msra.mxu0 0.0
        %517 = vmatprep.subr.mxu0 0.0
        %518 = vmatpush1.msra.mxu0 0.0
        %519 = vmatprep.subr.mxu0 0.0
        %520 = vmatpush1.msra.mxu0 0.0
        %521 = vmatprep.subr.mxu0 0.0
        %522 = vmatpush1.msra.mxu0 0.0
        %523 = vmatprep.subr.mxu0 0.0
        %524 = vmatpush1.msra.mxu0 0.0
        %525 = vmatprep.subr.mxu0 0.0
        %526 = vmatpush1.msra.mxu0 0.0
        %527 = vmatprep.subr.mxu0 0.0
        %528 = vmatpush1.msra.mxu0 0.0
        %529 = vmatprep.subr.mxu0 0.0
        %530 = vmatpush1.msra.mxu0 0.0
        %531 = vmatprep.subr.mxu0 0.0
        %532 = vmatpush1.msra.mxu0 0.0
        %533 = vmatprep.subr.mxu0 0.0
        %534 = vmatpush1.msra.mxu0 0.0
        %535 = vmatprep.subr.mxu0 0.0
        %536 = vmatpush1.msra.mxu0 0.0
        %537 = vmatprep.subr.mxu0 0.0
        %538 = vmatpush1.msra.mxu0 0.0
        %539 = vmatprep.subr.mxu0 0.0
        %540 = vmatpush1.msra.mxu0 0.0
        %541 = vmatprep.subr.mxu0 0.0
        %542 = vmatpush1.msra.mxu0 0.0
        %543 = vmatprep.subr.mxu0 0.0
        %544 = vmatpush1.msra.mxu0 0.0
        %545 = vmatprep.subr.mxu0 0.0
        %546 = vmatpush1.msra.mxu0 0.0
        %547 = vmatprep.subr.mxu0 0.0
        %548 = vmatpush1.msra.mxu0 0.0
        %549 = vmatprep.subr.mxu0 0.0
        %550 = vmatpush1.msra.mxu0 0.0
        %551 = vmatprep.subr.mxu0 0.0
        %552 = vmatpush1.msra.mxu0 0.0
        %553 = vmatprep.subr.mxu0 0.0
        %554 = vmatpush1.msra.mxu0 0.0
        %555 = vmatprep.subr.mxu0 0.0
        %556 = vmatpush1.msra.mxu0 0.0
        %557 = vmatprep.subr.mxu0 0.0
        %558 = vmatpush1.msra.mxu0 0.0
        %559 = vmatprep.subr.mxu0 0.0
        %560 = vmatpush1.msra.mxu0 0.0
        %561 = vmatprep.subr.mxu0 0.0
        %562 = vmatpush1.msra.mxu0 0.0
        %563 = vmatprep.subr.mxu0 0.0
        %564 = vmatpush1.msra.mxu0 0.0
        %565 = vmatprep.mubr.f32.mxu0 0.0
        %v566 = vand.u32 %v255, 4294901760
        %v567 = vsub.f32 %v255, %v566
        %v568 = vand.u32 %v567, 4294901760
        %569 = vmatmul.mubr.f32.gmra.mrb[0].mxu0 %v568
        %v570 = vpop.f32.mrb[0].mxu0
        %v571 = vadd.f32 %v495, %v570
        %v572 = vpop.f32.mrb[0].mxu0
        %v573 = vadd.f32 %v497, %v572
        %574 = vdwg.mxu0
        %v575 = vand.u32 %v260, 4294901760
        %v576 = vsub.f32 %v260, %v575
        %v577 = vand.u32 %v576, 4294901760
        %578 = vmatprep.subr.mxu0 %v577
        %v579 = vand.u32 %v258, 4294901760
        %v580 = vsub.f32 %v258, %v579
        %v581 = vand.u32 %v580, 4294901760
        %582 = vmatpush1.msra.mxu0 %v581
        %583 = vmatprep.subr.mxu0 0.0
        %584 = vmatpush1.msra.mxu0 0.0
        %585 = vmatprep.subr.mxu0 0.0
        %586 = vmatpush1.msra.mxu0 0.0
        %587 = vmatprep.subr.mxu0 0.0
        %588 = vmatpush1.msra.mxu0 0.0
        %589 = vmatprep.subr.mxu0 0.0
        %590 = vmatpush1.msra.mxu0 0.0
        %591 = vmatprep.subr.mxu0 0.0
        %592 = vmatpush1.msra.mxu0 0.0
        %593 = vmatprep.subr.mxu0 0.0
        %594 = vmatpush1.msra.mxu0 0.0
        %595 = vmatprep.subr.mxu0 0.0
        %596 = vmatpush1.msra.mxu0 0.0
        %597 = vmatprep.subr.mxu0 0.0
        %598 = vmatpush1.msra.mxu0 0.0
        %599 = vmatprep.subr.mxu0 0.0
        %600 = vmatpush1.msra.mxu0 0.0
        %601 = vmatprep.subr.mxu0 0.0
        %602 = vmatpush1.msra.mxu0 0.0
        %603 = vmatprep.subr.mxu0 0.0
        %604 = vmatpush1.msra.mxu0 0.0
        %605 = vmatprep.subr.mxu0 0.0
        %606 = vmatpush1.msra.mxu0 0.0
        %607 = vmatprep.subr.mxu0 0.0
        %608 = vmatpush1.msra.mxu0 0.0
        %609 = vmatprep.subr.mxu0 0.0
        %610 = vmatpush1.msra.mxu0 0.0
        %611 = vmatprep.subr.mxu0 0.0
        %612 = vmatpush1.msra.mxu0 0.0
        %613 = vmatprep.subr.mxu0 0.0
        %614 = vmatpush1.msra.mxu0 0.0
        %615 = vmatprep.subr.mxu0 0.0
        %616 = vmatpush1.msra.mxu0 0.0
        %617 = vmatprep.subr.mxu0 0.0
        %618 = vmatpush1.msra.mxu0 0.0
        %619 = vmatprep.subr.mxu0 0.0
        %620 = vmatpush1.msra.mxu0 0.0
        %621 = vmatprep.subr.mxu0 0.0
        %622 = vmatpush1.msra.mxu0 0.0
        %623 = vmatprep.subr.mxu0 0.0
        %624 = vmatpush1.msra.mxu0 0.0
        %625 = vmatprep.subr.mxu0 0.0
        %626 = vmatpush1.msra.mxu0 0.0
        %627 = vmatprep.subr.mxu0 0.0
        %628 = vmatpush1.msra.mxu0 0.0
        %629 = vmatprep.subr.mxu0 0.0
        %630 = vmatpush1.msra.mxu0 0.0
        %631 = vmatprep.subr.mxu0 0.0
        %632 = vmatpush1.msra.mxu0 0.0
        %633 = vmatprep.subr.mxu0 0.0
        %634 = vmatpush1.msra.mxu0 0.0
        %635 = vmatprep.subr.mxu0 0.0
        %636 = vmatpush1.msra.mxu0 0.0
        %637 = vmatprep.subr.mxu0 0.0
        %638 = vmatpush1.msra.mxu0 0.0
        %639 = vmatprep.subr.mxu0 0.0
        %640 = vmatpush1.msra.mxu0 0.0
        %641 = vmatprep.subr.mxu0 0.0
        %642 = vmatpush1.msra.mxu0 0.0
        %643 = vmatprep.subr.mxu0 0.0
        %644 = vmatpush1.msra.mxu0 0.0
        %645 = vmatprep.mubr.f32.mxu0 0.0
        %v646 = vand.u32 %v255, 4294901760
        %647 = vmatmul.mubr.f32.gmra.mrb[0].mxu0 %v646
        %v648 = vpop.f32.mrb[0].mxu0
        %v649 = vadd.f32 %v571, %v648
        %v650 = vpop.f32.mrb[0].mxu0
        %v651 = vadd.f32 %v573, %v650
        %652 = vdwg.mxu0
        %v653 = vand.u32 %v260, 4294901760
        %654 = vmatprep.subr.mxu0 %v653
        %v655 = vand.u32 %v258, 4294901760
        %656 = vmatpush1.msra.mxu0 %v655
        %657 = vmatprep.subr.mxu0 0.0
        %658 = vmatpush1.msra.mxu0 0.0
        %659 = vmatprep.subr.mxu0 0.0
        %660 = vmatpush1.msra.mxu0 0.0
        %661 = vmatprep.subr.mxu0 0.0
        %662 = vmatpush1.msra.mxu0 0.0
        %663 = vmatprep.subr.mxu0 0.0
        %664 = vmatpush1.msra.mxu0 0.0
        %665 = vmatprep.subr.mxu0 0.0
        %666 = vmatpush1.msra.mxu0 0.0
        %667 = vmatprep.subr.mxu0 0.0
        %668 = vmatpush1.msra.mxu0 0.0
        %669 = vmatprep.subr.mxu0 0.0
        %670 = vmatpush1.msra.mxu0 0.0
        %671 = vmatprep.subr.mxu0 0.0
        %672 = vmatpush1.msra.mxu0 0.0
        %673 = vmatprep.subr.mxu0 0.0
        %674 = vmatpush1.msra.mxu0 0.0
        %675 = vmatprep.subr.mxu0 0.0
        %676 = vmatpush1.msra.mxu0 0.0
        %677 = vmatprep.subr.mxu0 0.0
        %678 = vmatpush1.msra.mxu0 0.0
        %679 = vmatprep.subr.mxu0 0.0
        %680 = vmatpush1.msra.mxu0 0.0
        %681 = vmatprep.subr.mxu0 0.0
        %682 = vmatpush1.msra.mxu0 0.0
        %683 = vmatprep.subr.mxu0 0.0
        %684 = vmatpush1.msra.mxu0 0.0
        %685 = vmatprep.subr.mxu0 0.0
        %686 = vmatpush1.msra.mxu0 0.0
        %687 = vmatprep.subr.mxu0 0.0
        %688 = vmatpush1.msra.mxu0 0.0
        %689 = vmatprep.subr.mxu0 0.0
        %690 = vmatpush1.msra.mxu0 0.0
        %691 = vmatprep.subr.mxu0 0.0
        %692 = vmatpush1.msra.mxu0 0.0
        %693 = vmatprep.subr.mxu0 0.0
        %694 = vmatpush1.msra.mxu0 0.0
        %695 = vmatprep.subr.mxu0 0.0
        %696 = vmatpush1.msra.mxu0 0.0
        %697 = vmatprep.subr.mxu0 0.0
        %698 = vmatpush1.msra.mxu0 0.0
        %699 = vmatprep.subr.mxu0 0.0
        %700 = vmatpush1.msra.mxu0 0.0
        %701 = vmatprep.subr.mxu0 0.0
        %702 = vmatpush1.msra.mxu0 0.0
        %703 = vmatprep.subr.mxu0 0.0
        %704 = vmatpush1.msra.mxu0 0.0
        %705 = vmatprep.subr.mxu0 0.0
        %706 = vmatpush1.msra.mxu0 0.0
        %707 = vmatprep.subr.mxu0 0.0
        %708 = vmatpush1.msra.mxu0 0.0
        %709 = vmatprep.subr.mxu0 0.0
        %710 = vmatpush1.msra.mxu0 0.0
        %711 = vmatprep.subr.mxu0 0.0
        %712 = vmatpush1.msra.mxu0 0.0
        %713 = vmatprep.subr.mxu0 0.0
        %714 = vmatpush1.msra.mxu0 0.0
        %715 = vmatprep.subr.mxu0 0.0
        %716 = vmatpush1.msra.mxu0 0.0
        %717 = vmatprep.subr.mxu0 0.0
        %718 = vmatpush1.msra.mxu0 0.0
        %719 = vmatprep.mubr.f32.mxu0 0.0
        %v720 = vand.u32 %v255, 4294901760
        %721 = vmatmul.mubr.f32.gmra.mrb[0].mxu0 %v720
        %v722 = vpop.f32.mrb[0].mxu0
        %v723 = vadd.f32 %v649, %v722
        %v724 = vpop.f32.mrb[0].mxu0
        %v725 = vadd.f32 %v651, %v724
        %726 = vdwg.mxu0
        %v727 = vmax.f32 %v723, 0.0
        %v728 = vmax.f32 %v725, 0.0
        %729 = vst [vmem:[%s223] sm:$0xff] %v727
        %730 = vst [vmem:[%s223 + $0x8] sm:$0xff] %v728
        %s731 = sand.u32 %s128, 1
        %s732 = scalar_lea.sflag [#allocation3], %s731
        %s733 = sand.u32 %s128, 1
        %s734 = smul.addr %s733, 16
        %s735 = scalar_lea.vmem [#allocation2], %s734
        // Predicated region
        $region33: #{tpu_custom_call.1} parent=31 // pred_check
          %p736 = pneg %p138
        $region34: #{tpu_custom_call.1} parent=31 // pred_check_branch
          %738 = sbr.rel (%p736) target = $region36
        $region35: #{tpu_custom_call.1} parent=31 // pred_region
          %s739 = smul.u32 2, %s24
          %s741 = ssub.s32 256, 256
          %742 = vsyncadd %s732, %s741
          %s743 = smul.addr %s23, 2
          %s744 = sadd.s32 %s739, %s743
          %s745 = smul.addr %s22, 2
          %s746 = sadd.s32 %s744, %s745
          %s747 = smul.addr %s746, 128
          %s748 = scalar_lea.hbm %s3, %s747
          %s750 = sshll.u32 %s735, 4
          %s751 = int_to_ptr.vmem [resolvable:$true] %s750
          %753 = dma.vmem_to_hbm [thread:$0]  %s751, 256, %s748, %s732
        $region36: #{tpu_custom_call.1} parent=31 // pred_fallthru
          _
      $region32: #{tpu_custom_call.1} parent=5 // pred_fallthru
        _
      %p754 = scmp.le.s32.totalorder 2, %s12
      // Predicated region
      $region37: #{tpu_custom_call.1} parent=5 // pred_check
        %p755 = pneg %p754
      $region38: #{tpu_custom_call.1} parent=5 // pred_check_branch
        %757 = sbr.rel (%p755) target = $region40
      $region39: #{tpu_custom_call.1} parent=5 // pred_region
        %s758 = ssub.s32 %s12, 2
        // Predicated region
        $region41: #{tpu_custom_call.1} parent=39 // pred_check
          %p759 = pneg %p144
        $region42: #{tpu_custom_call.1} parent=39 // pred_check_branch
          %761 = sbr.rel (%p759) target = $region44
        $region43: #{tpu_custom_call.1} parent=39 // pred_region
          %s762 = sand.u32 %s129, 1
          %s763 = scalar_lea.sflag [#allocation3], %s762
          %s764 = sand.u32 %s129, 1
          %s765 = smul.addr %s764, 16
          %s766 = scalar_lea.vmem [#allocation2], %s765
          %767 = dma.done %s763, 256
        $region44: #{tpu_custom_call.1} parent=39 // pred_fallthru
          _
      $region40: #{tpu_custom_call.1} parent=5 // pred_fallthru
        _
    $region6: #{tpu_custom_call.1} parent=1 // loop_footer
      %s16 = sadd.s32 1, %s12
    $region7: #{tpu_custom_call.1} parent=1 // loop_footer_branch
      %11 = sbr.rel target = $region3
    $region8: #{tpu_custom_call.1} parent=1 // loop_exit
      _
    %768 = vsyncpa [#allocation3], 1
    %s769 = scalar_lea.sflag [#allocation3], 1
    %770 = vsyncpa %s769, 1

</llo_original>
